<compile_context>
chip_gen: v5e
topology: v5e:2x2
jax: 0.10.0
libtpu: 0.0.40
codegen_flags: <defaults>
</compile_context>

<pallas_src>
import math
import functools

import jax
import jax.numpy as jnp
from jax.experimental import pallas as pl
from jax.experimental.pallas import tpu as pltpu


# ----------------------------------------------------------------------------
# Parameter / buffer setup (plain JAX): the sinusoidal positional table.
# ----------------------------------------------------------------------------
def make_positional_encoding_table(max_len: int, d_model: int,
                                   dtype=jnp.float32) -> jnp.ndarray:
    """Returns pe of shape (max_len, 1, d_model), identical to the torch buffer."""
    position = jnp.arange(max_len, dtype=jnp.float32)[:, None]          # (L, 1)
    div_term = jnp.exp(
        jnp.arange(0, d_model, 2, dtype=jnp.float32)
        * (-math.log(10000.0) / d_model))                               # (D/2,)
    pe = jnp.zeros((max_len, d_model), dtype=jnp.float32)
    pe = pe.at[:, 0::2].set(jnp.sin(position * div_term))
    pe = pe.at[:, 1::2].set(jnp.cos(position * div_term))
    return pe[:, None, :].astype(dtype)                                  # (L, 1, D)


# ----------------------------------------------------------------------------
# Pallas kernel: (x + pe) followed by inverted dropout (integer threshold).
# ----------------------------------------------------------------------------
def _make_kernel(apply_dropout: bool, p: float):
    if apply_dropout:
        # Trace-time scalar constants (hoisted; no per-step broadcasts).
        keep_scale = 1.0 / (1.0 - p) if p < 1.0 else 0.0
        drop_threshold = min(int(round(p * 4294967296.0)), 4294967295)

        def kernel(x_ref, pe_ref, bits_ref, o_ref):
            # (block_s, B, D) + (block_s, 1, D) -> broadcast over batch.
            y = x_ref[...] + pe_ref[...]
            # keep with prob (1-p): compare raw uint32 bits to a fixed threshold.
            keep = bits_ref[...] >= jnp.uint32(drop_threshold)
            y = jnp.where(keep,
                          y * jnp.asarray(keep_scale, dtype=y.dtype),
                          jnp.zeros_like(y))
            o_ref[...] = y.astype(o_ref.dtype)
    else:
        def kernel(x_ref, pe_ref, o_ref):
            o_ref[...] = (x_ref[...] + pe_ref[...]).astype(o_ref.dtype)

    return kernel


# ----------------------------------------------------------------------------
# Block sizing: biggest block_s whose (padded-layout) double-buffered working
# set fits a conservative VMEM budget that is safe on v5e/v6e/v7x.
# ----------------------------------------------------------------------------
def _round_up(v: int, m: int) -> int:
    return (v + m - 1) // m * m


def _choose_block_s(S: int, B: int, D: int, itemsize: int,
                    with_bits: bool, vmem_budget_bytes: int) -> int:
    # VMEM footprint per sequence row, on the padded (8, 128) tile layout.
    padded_bd = _round_up(B, 8) * _round_up(max(D, 1), 128)
    padded_pe = 8 * _round_up(max(D, 1), 128)
    per_row = padded_bd * itemsize * 2            # x block + out block
    if with_bits:
        per_row += padded_bd * 4                  # uint32 dropout bits block
    per_row += padded_pe * itemsize               # pe block
    # Factor 2: every block is double-buffered by the pipeline.
    block_s = vmem_budget_bytes // (2 * per_row)
    block_s = max(1, min(int(block_s), S))
    if block_s >= 8:                              # keep sublane-friendly sizes
        block_s = (block_s // 8) * 8
    return block_s


# ----------------------------------------------------------------------------
# Forward wrapper.
# ----------------------------------------------------------------------------
@functools.partial(
    jax.jit,
    static_argnames=("p", "training", "block_s", "vmem_budget_bytes"))
def positional_encoding_forward(x, pe, key=None, *, p: float = 0.1,
                                training: bool = False, block_s=None,
                                vmem_budget_bytes: int = 20 * 1024 * 1024):
    """x: (S, B, D), pe: (max_len, 1, D), key: PRNG key (training only)."""
    S, B, D = x.shape
    assert pe.shape[0] >= S and pe.shape[1] == 1 and pe.shape[2] == D

    apply_dropout = bool(training) and p > 0.0

    # Slice + cast pe once in the wrapper so the kernel math stays in x.dtype
    # (bf16 is native on v6e/v7x; on v5e pass f32 inputs if bf16 VALU matters).
    pe_s = pe[:S].astype(x.dtype)                 # (S, 1, D)

    itemsize = x.dtype.itemsize
    if block_s is None:
        block_s = _choose_block_s(S, B, D, itemsize, apply_dropout,
                                  vmem_budget_bytes)
    block_s = max(1, min(int(block_s), S))
    grid = (pl.cdiv(S, block_s),)

    kernel = _make_kernel(apply_dropout, float(p))

    xlike_spec = pl.BlockSpec((block_s, B, D), lambda i: (i, 0, 0))
    pe_spec = pl.BlockSpec((block_s, 1, D), lambda i: (i, 0, 0))

    inputs = [x, pe_s]
    in_specs = [xlike_spec, pe_spec]
    bytes_accessed = 2 * S * B * D * itemsize + S * D * itemsize  # x + out + pe
    flops = S * B * D                                             # the add

    if apply_dropout:
        if key is None:
            raise ValueError("training=True with p>0 requires a PRNG `key`.")
        # TODO(synk): on a real TPU the in-kernel hardware PRNG
        # (pltpu.prng_seed/prng_random_bits) would avoid streaming these bits
        # from HBM, but it has no CPU/interpret lowering, so bits are fed in.
        bits = jax.random.bits(key, (S, B, D), dtype=jnp.uint32)
        inputs.append(bits)
        in_specs.append(xlike_spec)
        bytes_accessed += S * B * D * 4
        flops += 2 * S * B * D                    # compare + select

    return pl.pallas_call(
        kernel,
        out_shape=jax.ShapeDtypeStruct((S, B, D), x.dtype),
        grid=grid,
        in_specs=in_specs,
        out_specs=xlike_spec,
        compiler_params=pltpu.CompilerParams(
            # Grid steps are independent -> shard across both v7x TensorCores.
            dimension_semantics=("parallel",),
            # Working set is budgeted <= ~20 MiB; 32 MiB gives headroom and is
            # safe on v5e/v6e (128 MiB VMEM) and v7x (64 MiB VMEM).
            vmem_limit_bytes=32 * 1024 * 1024),
        cost_estimate=pl.CostEstimate(flops=flops, transcendentals=0,
                                      bytes_accessed=bytes_accessed),
    )(*inputs)


# ----------------------------------------------------------------------------
# Demo / self-test
# ----------------------------------------------------------------------------
if __name__ == "__main__":
    S, B, D = 8, 2, 32          # seq_len, batch, d_model
    MAX_LEN = 64
    P_DROP = 0.1

    root = jax.random.PRNGKey(0)
    x_key, drop_key = jax.random.split(root)
    x = jax.random.normal(x_key, (S, B, D), dtype=jnp.float32)
    pe = make_positional_encoding_table(MAX_LEN, D)

    ref = x + pe[:S]

    # Eval mode (dropout = identity): deterministic, check against reference.
    out_eval = positional_encoding_forward(x, pe, p=P_DROP, training=False)
    out_eval = jax.block_until_ready(out_eval)
    assert out_eval.shape == (S, B, D)
    assert jnp.allclose(out_eval, ref, atol=1e-6), "eval-mode mismatch"

    # Training mode (dropout active).
    # TODO(synk): the dropout mask is not bit-identical to torch's RNG stream
    # (semantics match: keep prob 1-p, kept values scaled by 1/(1-p)).
    out_train = positional_encoding_forward(
        x, pe, drop_key, p=P_DROP, training=True)
    out_train = jax.block_until_ready(out_train)
    assert out_train.shape == (S, B, D)
    # Every output element is either 0 (dropped) or (x+pe)/(1-p) (kept).
    ref_scaled = ref / (1.0 - P_DROP)
    kept = jnp.abs(out_train) > 0
    ok = jnp.where(kept, jnp.abs(out_train - ref_scaled) < 1e-5, True)
    assert bool(jnp.all(ok)), "training-mode dropout semantics mismatch"

    print("KERNEL_OK")
</pallas_src>

<mosaic_0001>
module attributes {stable_mosaic.version = 11 : i64} {
  func.func @kernel(%arg0: i32, %arg1: memref<8x2x32xf32, #tpu.memory_space<vmem>>, %arg2: memref<8x1x32xf32, #tpu.memory_space<vmem>>, %arg3: memref<8x2x32xf32, #tpu.memory_space<vmem>>) attributes {dimension_semantics = [#tpu.dimension_semantics<parallel>], iteration_bounds = array<i64: 1>, scalar_prefetch = 0 : i64, scratch_operands = 0 : i64, tpu.core_type = #tpu.core_type<tc>, window_params = [{transform_indices = @transform_0, window_bounds = array<i64: 8, 2, 32>}, {transform_indices = @transform_1, window_bounds = array<i64: 8, 1, 32>}, {transform_indices = @transform_2, window_bounds = array<i64: 8, 2, 32>}]} {
    %c0 = arith.constant 0 : index
    %c0_0 = arith.constant 0 : index
    %c0_1 = arith.constant 0 : index
    %0 = vector.load %arg1[%c0, %c0_0, %c0_1] : memref<8x2x32xf32, #tpu.memory_space<vmem>>, vector<8x2x32xf32>
    %c0_2 = arith.constant 0 : index
    %c0_3 = arith.constant 0 : index
    %c0_4 = arith.constant 0 : index
    %1 = vector.load %arg2[%c0_2, %c0_3, %c0_4] : memref<8x1x32xf32, #tpu.memory_space<vmem>>, vector<8x1x32xf32>
    %2 = vector.broadcast %1 : vector<8x1x32xf32> to vector<8x2x32xf32>
    %3 = arith.addf %0, %2 : vector<8x2x32xf32>
    %c0_5 = arith.constant 0 : index
    %c0_6 = arith.constant 0 : index
    %c0_7 = arith.constant 0 : index
    %4 = vector.load %arg3[%c0_5, %c0_6, %c0_7] : memref<8x2x32xf32, #tpu.memory_space<vmem>>, vector<8x2x32xf32>
    tpu.vector_store %arg3[%c0_5, %c0_6, %c0_7], %3 {strides = array<i32>} : memref<8x2x32xf32, #tpu.memory_space<vmem>>, vector<8x2x32xf32>,
    return
  }
  func.func @transform_0(%arg0: i32) -> (i32, i32, i32) {
    %c0_i32 = arith.constant 0 : i32
    %c0_i32_0 = arith.constant 0 : i32
    %c0_i32_1 = arith.constant 0 : i32
    return %arg0, %c0_i32, %c0_i32_0 : i32, i32, i32
  }
  func.func @transform_1(%arg0: i32) -> (i32, i32, i32) {
    %c0_i32 = arith.constant 0 : i32
    %c0_i32_0 = arith.constant 0 : i32
    %c0_i32_1 = arith.constant 0 : i32
    return %arg0, %c0_i32, %c0_i32_0 : i32, i32, i32
  }
  func.func @transform_2(%arg0: i32) -> (i32, i32, i32) {
    %c0_i32 = arith.constant 0 : i32
    %c0_i32_0 = arith.constant 0 : i32
    %c0_i32_1 = arith.constant 0 : i32
    return %arg0, %c0_i32, %c0_i32_0 : i32, i32, i32
  }
}

</mosaic_0001>

<llo_original>
// kernel: positional_encoding_forward.1
$region0: #{positional_encoding_forward.1}
  #allocation0 [shape = 'u32[]', space=smem, size = 0x4, offset = 0x4, fixed_abs, tag = 'smem constant byte address 0x4 - core index']
  #allocation1 [shape = 'u32[72,128]{1,0:T(1,128)}', space=vmem, size = 0x9000, scoped, tag = 'internal scratch']
  %s0 = inlined_call_operand.vmem [shape: f32[8,2,32], index: 0, kind: input, shape index: {}]
  %s1 = inlined_call_operand.vmem [shape: f32[8,1,32], index: 1, kind: input, shape index: {}]
  %s2 = inlined_call_operand.hbm [shape: f32[8,2,32], index: 2, kind: output, shape index: {}]
  %s3 = sld [smem:[#allocation0]]
  $region18: #{positional_encoding_forward.1} parent=0
    _
  %s5 = ssub.s32 1, %s3
  %s6 = scalar_select 0, %s5, %s3
  $region1: #{positional_encoding_forward.1} parent=0
    #allocation2 [shape = 'u8[8192]{0}', space=vmem, size = 0x2000, scoped, tag = 'output window, operand 0, single buffered']
    #allocation3 [shape = 's32[1]{0}', space=sflag, size = 0x4, scoped, tag = 'scoped memory for positional_encoding_forward.1']
    %7 = vsyncpa [#allocation3], 0
    // Predicated region
    $region2: #{positional_encoding_forward.1} parent=1 // pred_check
      _
    $region3: #{positional_encoding_forward.1} parent=1 // pred_check_branch
      %9 = sbr.rel (0) target = $region5
    $region4: #{positional_encoding_forward.1} parent=1 // pred_region
      _
    $region5: #{positional_encoding_forward.1} parent=1 // pred_fallthru
      _
    // Predicated region
    $region6: #{positional_encoding_forward.1} parent=1 // pred_check
      _
    $region7: #{positional_encoding_forward.1} parent=1 // pred_check_branch
      %11 = sbr.rel (0) target = $region9
    $region8: #{positional_encoding_forward.1} parent=1 // pred_region
      _
    $region9: #{positional_encoding_forward.1} parent=1 // pred_fallthru
      _
    %v12 = vld [vmem:[%s0] sm:$0x3]
    %v13 = vld [vmem:[%s0 + $0x2] sm:$0x3]
    %v14 = vld [vmem:[%s0 + $0x4] sm:$0x3]
    %v15 = vld [vmem:[%s0 + $0x6] sm:$0x3]
    %v16 = vld [vmem:[%s0 + $0x8] sm:$0x3]
    %v17 = vld [vmem:[%s0 + $0xa] sm:$0x3]
    %v18 = vld [vmem:[%s0 + $0xc] sm:$0x3]
    %v19 = vld [vmem:[%s0 + $0xe] sm:$0x3]
    %v20 = vld [vmem:[%s1] sm:$0x1]
    %v21 = vld [vmem:[%s1 + $0x1] sm:$0x1]
    %v22 = vld [vmem:[%s1 + $0x2] sm:$0x1]
    %v23 = vld [vmem:[%s1 + $0x3] sm:$0x1]
    %v24 = vld [vmem:[%s1 + $0x4] sm:$0x1]
    %v25 = vld [vmem:[%s1 + $0x5] sm:$0x1]
    %v26 = vld [vmem:[%s1 + $0x6] sm:$0x1]
    %v27 = vld [vmem:[%s1 + $0x7] sm:$0x1]
    %v36 = vperm.slane %v20, 0
    %v37 = vperm.slane %v21, 0
    %v38 = vperm.slane %v22, 0
    %v39 = vperm.slane %v23, 0
    %v40 = vperm.slane %v24, 0
    %v41 = vperm.slane %v25, 0
    %v42 = vperm.slane %v26, 0
    %v43 = vperm.slane %v27, 0
    %v52 = vadd.f32 %v12, %v36
    %v53 = vadd.f32 %v13, %v37
    %v54 = vadd.f32 %v14, %v38
    %v55 = vadd.f32 %v15, %v39
    %v56 = vadd.f32 %v16, %v40
    %v57 = vadd.f32 %v17, %v41
    %v58 = vadd.f32 %v18, %v42
    %v59 = vadd.f32 %v19, %v43
    %vm60 = vcmask 254976
    %61 = vst.msk [vmem:[#allocation2] sm:$0x3] %vm60, %v52
    %62 = vst.msk [vmem:[#allocation2 + $0x2] sm:$0x3] %vm60, %v53
    %63 = vst.msk [vmem:[#allocation2 + $0x4] sm:$0x3] %vm60, %v54
    %64 = vst.msk [vmem:[#allocation2 + $0x6] sm:$0x3] %vm60, %v55
    %65 = vst.msk [vmem:[#allocation2 + $0x8] sm:$0x3] %vm60, %v56
    %66 = vst.msk [vmem:[#allocation2 + $0xa] sm:$0x3] %vm60, %v57
    %67 = vst.msk [vmem:[#allocation2 + $0xc] sm:$0x3] %vm60, %v58
    %68 = vst.msk [vmem:[#allocation2 + $0xe] sm:$0x3] %vm60, %v59
    // Predicated region
    $region10: #{positional_encoding_forward.1} parent=1 // pred_check
      _
    $region11: #{positional_encoding_forward.1} parent=1 // pred_check_branch
      %70 = sbr.rel (0) target = $region13
    $region12: #{positional_encoding_forward.1} parent=1 // pred_region
      %72 = vsyncadd [#allocation3], 0
      %s73 = sshll.u32 [#allocation2], 4
      %s74 = int_to_ptr.vmem [resolvable:$true] %s73
      %s75 = sshll.u32 %s2, 4
      %s76 = int_to_ptr.hbm [resolvable:$true] %s75
      %81 = dma.vmem_to_hbm [thread:$0]  %s74, 256, %s76, [#allocation3], 32, 32, 2
    $region13: #{positional_encoding_forward.1} parent=1 // pred_fallthru
      _
    // Predicated region
    $region14: #{positional_encoding_forward.1} parent=1 // pred_check
      _
    $region15: #{positional_encoding_forward.1} parent=1 // pred_check_branch
      %83 = sbr.rel (0) target = $region17
    $region16: #{positional_encoding_forward.1} parent=1 // pred_region
      %85 = dma.done [#allocation3], 256
    $region17: #{positional_encoding_forward.1} parent=1 // pred_fallthru
      _
    %86 = vsyncpa [#allocation3], 1

</llo_original>
